<compile_context>
chip_gen: v7x
topology: tpu7x:2x2x1
jax: 0.10.0
libtpu: 0.0.40
codegen_flags: <defaults>
</compile_context>

<pallas_src>
import jax
import jax.numpy as jnp
from jax.experimental import pallas as pl
from jax.experimental.pallas import tpu as pltpu


def _round_up(x, m):
    return ((x + m - 1) // m) * m


def _patch_embed_kernel(x_ref, w_ref, b_ref, o_ref):
    # x_ref: (tm, K) patch tile (compute dtype)
    # w_ref: (K, tE) projection weight tile (compute dtype)
    # b_ref: (1, tE) bias, fp32
    # o_ref: (tm, tE) output tile
    acc = jnp.dot(x_ref[...], w_ref[...], preferred_element_type=jnp.float32)
    o_ref[...] = (acc + b_ref[...]).astype(o_ref.dtype)


def patch_embed(x, weight, bias, patch_size, *, compute_dtype=None, out_dtype=None):
    """x: (B, C, H, W); weight: (E, C, P, P); bias: (E,) -> (B, N, E).

    compute_dtype: matmul input dtype; default bf16 when x is fp32 (fp32
      accumulation + fp32 bias epilogue), else x.dtype.
    out_dtype: output dtype (default x.dtype); pass jnp.bfloat16 if the
      consumer is bf16 to halve the output writeback.
    """
    B, C, H, W = x.shape
    E = weight.shape[0]
    P = int(patch_size)
    assert H % P == 0 and W % P == 0, (H, W, P)
    nh, nw = H // P, W // P
    N = nh * nw
    K = C * P * P
    M = B * N

    if compute_dtype is None:
        compute_dtype = jnp.bfloat16 if x.dtype == jnp.float32 else x.dtype
    cdt = jnp.dtype(compute_dtype)
    odt = jnp.dtype(out_dtype) if out_dtype is not None else x.dtype

    # --- Patch extraction: single XLA transpose pass; the fp32->bf16 cast
    # fuses into it.  Patch vector ordered (c, kh, kw) to match the Conv2d
    # weight layout (E, C, P, P).
    xp = x.reshape(B, C, nh, P, nw, P)
    xp = jnp.transpose(xp, (0, 2, 4, 1, 3, 5)).reshape(M, K)
    if xp.dtype != cdt:
        xp = xp.astype(cdt)

    # Weight as (K, E); small one-time host-side transpose (see header note).
    w2d = weight.reshape(E, K).T.astype(cdt)        # (K, E)
    b2d = bias.reshape(1, E).astype(jnp.float32)    # fp32 epilogue bias

    # --- Lane-dense output: pad E only when E % 128 != 0.
    E_pad = _round_up(max(E, 128), 128)
    if E_pad != E:
        w2d = jnp.pad(w2d, ((0, 0), (0, E_pad - E)))
        b2d = jnp.pad(b2d, ((0, 0), (0, E_pad - E)))

    x_bytes = cdt.itemsize
    o_bytes = odt.itemsize
    sub = 16 if x_bytes < 4 else 8            # sublane granularity of the M tile
    k_lanes = _round_up(K, 128)               # lane padding of K in VMEM
    k_sub = _round_up(K, sub)                 # sublane padding of the weight

    # --- Per-generation VMEM budget (v5e/v6e: 128 MiB phys, v7x: 64 MiB).
    phys = 64 * 1024 * 1024                   # conservative fallback (v7x)
    try:
        phys = int(getattr(pltpu.get_tpu_info(), "vmem_capacity_bytes", phys))
    except Exception:
        pass
    limit_cap = min(phys * 3 // 4, 112 * 1024 * 1024)  # ~48 MiB on v7x, 96 MiB on v5e/v6e
    budget = limit_cap // 2                             # tile/resident sizing budget

    # --- Resident-weight guard: tile E if the whole weight would crowd VMEM.
    resident_cap = max(budget // 3, 8 * 1024 * 1024)
    n128 = E_pad // 128
    grid_e = n128
    for g in range(1, n128 + 1):
        if n128 % g == 0 and k_sub * (E_pad // g) * x_bytes <= resident_cap:
            grid_e = g
            break
    tE = E_pad // grid_e

    w_resident = k_sub * tE * x_bytes * (1 if grid_e == 1 else 2)
    b_resident = 8 * E_pad * 4
    per_row = 2 * k_lanes * x_bytes + 2 * tE * o_bytes   # dbl-buffered in/out tiles

    fit = max(budget - w_resident - b_resident, 0) // per_row
    tm_cap = 1024 if x_bytes < 4 else 512
    tm = max(sub, min(tm_cap, (fit // sub) * sub))

    # v7x megacore: keep >= 2 (preferably even) M steps for big problems.
    if tm >= M and M > 256:
        tm = _round_up(pl.cdiv(M, 2), sub)
    if tm >= M:
        tm = M                         # single full-extent block (always legal)
        grid_m = 1
    else:
        grid_m = pl.cdiv(M, tm)
        if grid_m > 1 and grid_m % 2 == 1:
            tm_even = _round_up(pl.cdiv(M, grid_m + 1), sub)
            if 0 < tm_even < M:
                tm = tm_even
                grid_m = pl.cdiv(M, tm)

    vmem_est = (w_resident + b_resident
                + 2 * tm * k_lanes * x_bytes + 2 * tm * tE * o_bytes)
    vmem_limit = int(min(limit_cap, max(16 * 1024 * 1024, vmem_est + vmem_est // 2)))

    cost = pl.CostEstimate(
        flops=2 * M * K * E_pad,
        transcendentals=0,
        bytes_accessed=int(M * K * x_bytes + K * E_pad * x_bytes
                           + M * E_pad * o_bytes),
    )

    if grid_e == 1:
        grid = (grid_m,)
        in_specs = [
            pl.BlockSpec((tm, K), lambda i: (i, 0)),
            # Grid-invariant operands: whole-array resident in VMEM (single
            # copy, no double-buffer waste).
            pl.BlockSpec(memory_space=pltpu.MemorySpace.VMEM),
            pl.BlockSpec(memory_space=pltpu.MemorySpace.VMEM),
        ]
        out_specs = pl.BlockSpec((tm, E_pad), lambda i: (i, 0))
        dims = ("parallel",)
    else:
        # e innermost: x's block index is unchanged across e, so the x tile
        # is fetched once per M step even though the weight is streamed.
        grid = (grid_m, grid_e)
        in_specs = [
            pl.BlockSpec((tm, K), lambda i, j: (i, 0)),
            pl.BlockSpec((K, tE), lambda i, j: (0, j)),
            pl.BlockSpec((1, tE), lambda i, j: (0, j)),
        ]
        out_specs = pl.BlockSpec((tm, tE), lambda i, j: (i, j))
        dims = ("parallel", "arbitrary")

    out = pl.pallas_call(
        _patch_embed_kernel,
        out_shape=jax.ShapeDtypeStruct((M, E_pad), odt),
        grid_spec=pltpu.PrefetchScalarGridSpec(
            num_scalar_prefetch=0,
            grid=grid,
            in_specs=in_specs,
            out_specs=out_specs,
        ),
        compiler_params=pltpu.CompilerParams(
            dimension_semantics=dims,
            vmem_limit_bytes=vmem_limit,
        ),
        cost_estimate=cost,
    )(xp, w2d, b2d)

    if E_pad != E:
        out = out[:, :E]
    return out.reshape(B, N, E)


if __name__ == "__main__":
    # Small shapes consistent with the module: img_size=16, patch_size=4,
    # in_chans=4, embed_dim=32 -> num_patches = 16.
    B, C, H, W = 2, 4, 16, 16
    P = 4
    E = 32

    key = jax.random.PRNGKey(0)
    kx, kw, kb = jax.random.split(key, 3)
    x = jax.random.normal(kx, (B, C, H, W), dtype=jnp.float32)
    weight = jax.random.normal(kw, (E, C, P, P), dtype=jnp.float32) * 0.02
    bias = jax.random.normal(kb, (E,), dtype=jnp.float32) * 0.02

    pe = jax.jit(patch_embed, static_argnums=(3,),
                 static_argnames=("compute_dtype", "out_dtype"))

    # Reference: lax conv with the same semantics as nn.Conv2d(stride=kernel).
    ref = jax.lax.conv_general_dilated(
        x, weight, window_strides=(P, P), padding="VALID",
        dimension_numbers=("NCHW", "OIHW", "NCHW"))
    ref = ref + bias[None, :, None, None]
    ref = ref.reshape(B, E, -1).transpose(0, 2, 1)   # (B, N, E)

    # fp32 compute path: strict check.
    out_f32 = jax.block_until_ready(pe(x, weight, bias, P, compute_dtype=jnp.float32))
    assert out_f32.shape == (B, (H // P) * (W // P), E), out_f32.shape
    assert jnp.allclose(out_f32, ref, atol=1e-5, rtol=1e-5)

    # Default path (bf16 MXU compute, fp32 accumulation + epilogue): loose check.
    out_auto = jax.block_until_ready(pe(x, weight, bias, P))
    assert out_auto.shape == out_f32.shape
    assert jnp.allclose(out_auto, ref, atol=2e-2, rtol=2e-2)

    # Optional bf16 output for bf16 consumers.
    out_bf16 = jax.block_until_ready(pe(x, weight, bias, P, out_dtype=jnp.bfloat16))
    assert out_bf16.dtype == jnp.bfloat16 and out_bf16.shape == out_f32.shape
    assert jnp.allclose(out_bf16.astype(jnp.float32), ref, atol=5e-2, rtol=5e-2)

    print("KERNEL_OK")
</pallas_src>

<mosaic_0001>
module attributes {stable_mosaic.version = 11 : i64} {
  func.func @_patch_embed_kernel(%arg0: i32, %arg1: memref<32x64xf32, #tpu.memory_space<vmem>>, %arg2: memref<64x128xf32, #tpu.memory_space<vmem>>, %arg3: memref<1x128xf32, #tpu.memory_space<vmem>>, %arg4: memref<32x128xf32, #tpu.memory_space<vmem>>) attributes {dimension_semantics = [#tpu.dimension_semantics<parallel>], iteration_bounds = array<i64: 1>, scalar_prefetch = 0 : i64, scratch_operands = 0 : i64, tpu.core_type = #tpu.core_type<tc>, window_params = [{transform_indices = @transform_0, window_bounds = array<i64: 32, 64>}, {pipeline_mode = #tpu.pipeline_mode<synchronous>, transform_indices = @transform_1, window_bounds = array<i64: 64, 128>}, {pipeline_mode = #tpu.pipeline_mode<synchronous>, transform_indices = @transform_2, window_bounds = array<i64: 1, 128>}, {transform_indices = @transform_3, window_bounds = array<i64: 32, 128>}]} {
    %c0 = arith.constant 0 : index
    %c0_0 = arith.constant 0 : index
    %0 = vector.load %arg1[%c0, %c0_0] : memref<32x64xf32, #tpu.memory_space<vmem>>, vector<32x64xf32>
    %c0_1 = arith.constant 0 : index
    %c0_2 = arith.constant 0 : index
    %1 = vector.load %arg2[%c0_1, %c0_2] : memref<64x128xf32, #tpu.memory_space<vmem>>, vector<64x128xf32>
    %cst = arith.constant dense<0.000000e+00> : vector<32x128xf32>
    %2 = tpu.matmul %0, %1, %cst {dimension_numbers = #tpu.dot_dimension_numbers<[1], [0], [0], [1], [0, 0, 1, 1], [], []>} : vector<32x64xf32>, vector<64x128xf32>, vector<32x128xf32> -> vector<32x128xf32>
    %c0_3 = arith.constant 0 : index
    %c0_4 = arith.constant 0 : index
    %3 = vector.load %arg3[%c0_3, %c0_4] : memref<1x128xf32, #tpu.memory_space<vmem>>, vector<1x128xf32>
    %4 = vector.broadcast %3 : vector<1x128xf32> to vector<32x128xf32>
    %5 = arith.addf %2, %4 : vector<32x128xf32>
    %c0_5 = arith.constant 0 : index
    %c0_6 = arith.constant 0 : index
    %6 = vector.load %arg4[%c0_5, %c0_6] : memref<32x128xf32, #tpu.memory_space<vmem>>, vector<32x128xf32>
    tpu.vector_store %arg4[%c0_5, %c0_6], %5 {strides = array<i32>} : memref<32x128xf32, #tpu.memory_space<vmem>>, vector<32x128xf32>,
    return
  }
  func.func @transform_0(%arg0: i32) -> (i32, i32) {
    %c0_i32 = arith.constant 0 : i32
    %c0_i32_0 = arith.constant 0 : i32
    return %arg0, %c0_i32 : i32, i32
  }
  func.func @transform_1(%arg0: i32) -> (i32, i32) {
    %c0_i32 = arith.constant 0 : i32
    %c0_i32_0 = arith.constant 0 : i32
    %c0_i32_1 = arith.constant 0 : i32
    return %c0_i32, %c0_i32_0 : i32, i32
  }
  func.func @transform_2(%arg0: i32) -> (i32, i32) {
    %c0_i32 = arith.constant 0 : i32
    %c0_i32_0 = arith.constant 0 : i32
    %c0_i32_1 = arith.constant 0 : i32
    return %c0_i32, %c0_i32_0 : i32, i32
  }
  func.func @transform_3(%arg0: i32) -> (i32, i32) {
    %c0_i32 = arith.constant 0 : i32
    %c0_i32_0 = arith.constant 0 : i32
    return %arg0, %c0_i32 : i32, i32
  }
}

</mosaic_0001>

<llo_original>
// kernel: patch_embed.1
$region0: #{patch_embed.1}
  #allocation0 [shape = 'u32[]', space=smem, size = 0x4, offset = 0x4, fixed_abs, tag = 'smem constant byte address 0x4 - core index']
  #allocation1 [shape = 'u32[144,128]{1,0:T(1,128)}', space=vmem, size = 0x12000, scoped, tag = 'internal scratch']
  %s0 = inlined_call_operand.vmem [shape: f32[32,64], index: 0, kind: input, shape index: {}]
  %s1 = inlined_call_operand.vmem [shape: f32[64,128], index: 1, kind: input, shape index: {}]
  %s2 = inlined_call_operand.vmem [shape: f32[1,128], index: 2, kind: input, shape index: {}]
  %s3 = inlined_call_operand.hbm [shape: f32[32,128], index: 3, kind: output, shape index: {}]
  %s4 = sld [smem:[#allocation0]]
  $region22: #{patch_embed.1} parent=0
    _
  %s6 = ssub.s32 1, %s4
  %s7 = scalar_select 0, %s6, %s4
  $region1: #{patch_embed.1} parent=0
    #allocation2 [shape = 'u8[16384]{0}', space=vmem, size = 0x4000, scoped, tag = 'output window, operand 0, single buffered']
    #allocation3 [shape = 's32[1]{0}', space=sflag, size = 0x4, scoped, tag = 'scoped memory for patch_embed.1']
    %8 = vsyncpa [#allocation3], 0
    // Predicated region
    $region2: #{patch_embed.1} parent=1 // pred_check
      _
    $region3: #{patch_embed.1} parent=1 // pred_check_branch
      %10 = sbr.rel (0) target = $region5
    $region4: #{patch_embed.1} parent=1 // pred_region
      _
    $region5: #{patch_embed.1} parent=1 // pred_fallthru
      _
    // Predicated region
    $region6: #{patch_embed.1} parent=1 // pred_check
      _
    $region7: #{patch_embed.1} parent=1 // pred_check_branch
      %12 = sbr.rel (0) target = $region9
    $region8: #{patch_embed.1} parent=1 // pred_region
      _
    $region9: #{patch_embed.1} parent=1 // pred_fallthru
      _
    // Predicated region
    $region10: #{patch_embed.1} parent=1 // pred_check
      _
    $region11: #{patch_embed.1} parent=1 // pred_check_branch
      %14 = sbr.rel (0) target = $region13
    $region12: #{patch_embed.1} parent=1 // pred_region
      _
    $region13: #{patch_embed.1} parent=1 // pred_fallthru
      _
    %v15 = vld [vmem:[%s0] sm:$0xff]
    %v16 = vld [vmem:[%s0 + $0x8] sm:$0xff]
    %v17 = vld [vmem:[%s0 + $0x10] sm:$0xff]
    %v18 = vld [vmem:[%s0 + $0x18] sm:$0xff]
    %v19 = vld [vmem:[%s1] sm:$0xff]
    %v20 = vld [vmem:[%s1 + $0x8] sm:$0xff]
    %v21 = vld [vmem:[%s1 + $0x10] sm:$0xff]
    %v22 = vld [vmem:[%s1 + $0x18] sm:$0xff]
    %v23 = vld [vmem:[%s1 + $0x20] sm:$0xff]
    %v24 = vld [vmem:[%s1 + $0x28] sm:$0xff]
    %v25 = vld [vmem:[%s1 + $0x30] sm:$0xff]
    %v26 = vld [vmem:[%s1 + $0x38] sm:$0xff]
    %v27 = vld [vmem:[%s2] sm:$0x1]
    %v29 = vlaneseq
    %v30 = vshrl.u32 %v29, 7
    %v31 = vsub.s32 0, %v30
    %v32 = vrot.slane %v27, %v31
    %vm34 = vcmask 523264
    %v36 = vsel %vm34, %v15, 0
    %v39 = vsel %vm34, %v16, 0
    %v42 = vsel %vm34, %v17, 0
    %v45 = vsel %vm34, %v18, 0
    %47 = vmatprep.subr.mxu0 0.0
    %48 = vmatpush1.msra.mxu0 %v19
    %49 = vmatprep.subr.mxu0 0.0
    %50 = vmatpush1.msra.mxu0 %v20
    %51 = vmatprep.subr.mxu0 0.0
    %52 = vmatpush1.msra.mxu0 %v21
    %53 = vmatprep.subr.mxu0 0.0
    %54 = vmatpush1.msra.mxu0 %v22
    %55 = vmatprep.subr.mxu0 0.0
    %56 = vmatpush1.msra.mxu0 %v23
    %57 = vmatprep.subr.mxu0 0.0
    %58 = vmatpush1.msra.mxu0 %v24
    %59 = vmatprep.subr.mxu0 0.0
    %60 = vmatpush1.msra.mxu0 %v25
    %61 = vmatprep.subr.mxu0 0.0
    %62 = vmatpush1.msra.mxu0 %v26
    %63 = vmatprep.subr.mxu0 0.0
    %64 = vmatpush1.msra.mxu0 0.0
    %65 = vmatprep.subr.mxu0 0.0
    %66 = vmatpush1.msra.mxu0 0.0
    %67 = vmatprep.subr.mxu0 0.0
    %68 = vmatpush1.msra.mxu0 0.0
    %69 = vmatprep.subr.mxu0 0.0
    %70 = vmatpush1.msra.mxu0 0.0
    %71 = vmatprep.subr.mxu0 0.0
    %72 = vmatpush1.msra.mxu0 0.0
    %73 = vmatprep.subr.mxu0 0.0
    %74 = vmatpush1.msra.mxu0 0.0
    %75 = vmatprep.subr.mxu0 0.0
    %76 = vmatpush1.msra.mxu0 0.0
    %77 = vmatprep.subr.mxu0 0.0
    %78 = vmatpush1.msra.mxu0 0.0
    %79 = vmatprep.subr.mxu0 0.0
    %80 = vmatpush1.msra.mxu0 0.0
    %81 = vmatprep.subr.mxu0 0.0
    %82 = vmatpush1.msra.mxu0 0.0
    %83 = vmatprep.subr.mxu0 0.0
    %84 = vmatpush1.msra.mxu0 0.0
    %85 = vmatprep.subr.mxu0 0.0
    %86 = vmatpush1.msra.mxu0 0.0
    %87 = vmatprep.subr.mxu0 0.0
    %88 = vmatpush1.msra.mxu0 0.0
    %89 = vmatprep.subr.mxu0 0.0
    %90 = vmatpush1.msra.mxu0 0.0
    %91 = vmatprep.subr.mxu0 0.0
    %92 = vmatpush1.msra.mxu0 0.0
    %93 = vmatprep.subr.mxu0 0.0
    %94 = vmatpush1.msra.mxu0 0.0
    %95 = vmatprep.subr.mxu0 0.0
    %96 = vmatpush1.msra.mxu0 0.0
    %97 = vmatprep.subr.mxu0 0.0
    %98 = vmatpush1.msra.mxu0 0.0
    %99 = vmatprep.subr.mxu0 0.0
    %100 = vmatpush1.msra.mxu0 0.0
    %101 = vmatprep.subr.mxu0 0.0
    %102 = vmatpush1.msra.mxu0 0.0
    %103 = vmatprep.subr.mxu0 0.0
    %104 = vmatpush1.msra.mxu0 0.0
    %105 = vmatprep.subr.mxu0 0.0
    %106 = vmatpush1.msra.mxu0 0.0
    %107 = vmatprep.subr.mxu0 0.0
    %108 = vmatpush1.msra.mxu0 0.0
    %109 = vmatprep.subr.mxu0 0.0
    %110 = vmatpush1.msra.mxu0 0.0
    %111 = vmatprep.mubr.f32.mxu0 0.0
    %112 = vmatmul.mubr.f32.gmra.mrb[0].mxu0 %v36
    %v113 = vpop.f32.mrb[0].mxu0
    %v114 = vadd.f32 %v32, %v113
    %v115 = vpop.f32.mrb[0].mxu0
    %116 = vmatprep.mubr.f32.mxu0 0.0
    %117 = vmatmul.mubr.f32.gmra.mrb[0].mxu0 %v39
    %v118 = vpop.f32.mrb[0].mxu0
    %v119 = vadd.f32 %v32, %v118
    %v120 = vpop.f32.mrb[0].mxu0
    %121 = vmatprep.mubr.f32.mxu0 0.0
    %122 = vmatmul.mubr.f32.gmra.mrb[0].mxu0 %v42
    %v123 = vpop.f32.mrb[0].mxu0
    %v124 = vadd.f32 %v32, %v123
    %v125 = vpop.f32.mrb[0].mxu0
    %126 = vmatprep.mubr.f32.mxu0 0.0
    %127 = vmatmul.mubr.f32.gmra.mrb[0].mxu0 %v45
    %v128 = vpop.f32.mrb[0].mxu0
    %v129 = vadd.f32 %v32, %v128
    %v130 = vpop.f32.mrb[0].mxu0
    %131 = vdwg.mxu0
    %132 = vst [vmem:[#allocation2] sm:$0xff] %v114
    %133 = vst [vmem:[#allocation2 + $0x8] sm:$0xff] %v119
    %134 = vst [vmem:[#allocation2 + $0x10] sm:$0xff] %v124
    %135 = vst [vmem:[#allocation2 + $0x18] sm:$0xff] %v129
    // Predicated region
    $region14: #{patch_embed.1} parent=1 // pred_check
      _
    $region15: #{patch_embed.1} parent=1 // pred_check_branch
      %137 = sbr.rel (0) target = $region17
    $region16: #{patch_embed.1} parent=1 // pred_region
      %s139 = ssub.s32 512, 512
      %140 = vsyncadd [#allocation3], %s139
      %s141 = sshll.u32 [#allocation2], 4
      %s142 = int_to_ptr.vmem [resolvable:$true] %s141
      %147 = dma.vmem_to_hbm [thread:$0]  %s142, 512, %s3, [#allocation3], 128, 128, 8
    $region17: #{patch_embed.1} parent=1 // pred_fallthru
      _
    // Predicated region
    $region18: #{patch_embed.1} parent=1 // pred_check
      _
    $region19: #{patch_embed.1} parent=1 // pred_check_branch
      %149 = sbr.rel (0) target = $region21
    $region20: #{patch_embed.1} parent=1 // pred_region
      %150 = dma.done [#allocation3], 512
    $region21: #{patch_embed.1} parent=1 // pred_fallthru
      _
    %151 = vsyncpa [#allocation3], 1

</llo_original>
